<compile_context>
chip_gen: v7x
topology: tpu7x:2x2x1
jax: 0.10.0
libtpu: 0.0.40
codegen_flags: <defaults>
</compile_context>

<pallas_src>
import functools
import math

import jax
import jax.numpy as jnp
from jax.experimental import pallas as pl
from jax.experimental.pallas import tpu as pltpu


def _abs_diff_sum_kernel(x_ref, y_ref, out_ref, *, rows_total, tile_r, lanes,
                         acc_rows, blocks_per_core, needs_mask):
    """Accumulate per-lane sum(|x - y|) over the row (folded-batch) axis.

    x_ref / y_ref : (tile_r, lanes) blocks of the reshaped (R, L) inputs,
                    native dtype (f32 / bf16), upcast to f32 on the VPU.
    out_ref       : (1, acc_rows, lanes) f32 block, resident across grid
                    axis 1 (the reduction); holds acc_rows*lanes partial sums.
    """
    c = pl.program_id(0)          # core split ("parallel")
    i = pl.program_id(1)          # row-block reduction ("arbitrary")

    @pl.when(i == 0)
    def _():
        out_ref[...] = jnp.zeros_like(out_ref)

    x = x_ref[...].astype(jnp.float32)
    y = y_ref[...].astype(jnp.float32)
    diff = jnp.abs(x - y)                                  # (tile_r, lanes)

    def _accum(d):
        # Fold rows in groups of 8 sublanes: pure element-wise vreg adds each
        # step; the cross-lane reduce happens once, in the wrapper epilogue.
        if acc_rows == 8:
            p = jnp.sum(d.reshape(tile_r // 8, 8, lanes), axis=0)
        else:
            p = jnp.sum(d, axis=0, keepdims=True)
        out_ref[...] += p[None]

    if needs_mask:   # static flag: only emitted when some step can be partial
        start = (c * blocks_per_core + i) * tile_r
        is_full = start + tile_r <= rows_total

        @pl.when(is_full)
        def _():
            _accum(diff)

        @pl.when(jnp.logical_not(is_full))
        def _():
            row = jax.lax.broadcasted_iota(jnp.int32, diff.shape, 0) + start
            _accum(jnp.where(row < rows_total, diff, 0.0))
    else:
        _accum(diff)


def multitask_loss(preds, targets, log_vars, *, target_step_bytes=8 << 20,
                   num_cores=2):
    """Pallas TPU implementation of MultiTaskLoss.forward.

    preds, targets: (B, T) float32 or bfloat16
    log_vars:       (T,)   float32 (the nn.Parameter)
    returns (total_loss: scalar f32, per_task_mae: (T,) f32)
    """
    B, T = preds.shape
    assert targets.shape == (B, T)

    # --- Layout: free row-major reshape (B, T) -> (R, L), L multiple of 128.
    lb = 128 // math.gcd(T, 128)          # batch samples folded onto lanes
    L = lb * T
    b_pad = pl.cdiv(B, lb) * lb
    if b_pad != B:
        # Zero-pad both operands (< lb samples): |diff| = 0 there, so the
        # per-task sums are unaffected; we still divide by the true B.
        pad = ((0, b_pad - B), (0, 0))
        preds = jnp.pad(preds, pad)
        targets = jnp.pad(targets, pad)
    R = b_pad // lb
    x = preds.reshape(R, L)               # contiguous row-major reshape: free
    y = targets.reshape(R, L)

    # --- Tile sizing: ~8 MiB of streamed input per grid step (both inputs).
    itemsize = jnp.dtype(preds.dtype).itemsize
    bytes_per_row = 2 * L * itemsize
    tr = max(1, target_step_bytes // bytes_per_row)
    if tr >= R:
        tile_r = R                        # single full-extent block
    else:
        tile_r = max(32, (tr // 32) * 32)  # 32-row granularity: dtype-safe
        if tile_r >= R:
            tile_r = R
    total_blocks = pl.cdiv(R, tile_r)

    nc = num_cores if total_blocks >= num_cores else 1
    blocks_per_core = pl.cdiv(total_blocks, nc)
    needs_mask = (R % tile_r != 0) or (nc * blocks_per_core != total_blocks)
    acc_rows = 8 if (tile_r % 8 == 0) else 1

    kernel = functools.partial(
        _abs_diff_sum_kernel, rows_total=R, tile_r=tile_r, lanes=L,
        acc_rows=acc_rows, blocks_per_core=blocks_per_core,
        needs_mask=needs_mask)

    def in_map(c, i, _bpc=blocks_per_core, _nb=total_blocks):
        # Clamp steps past the end (core-split rounding) to a valid block; the
        # kernel masks their contribution to zero.
        return (jnp.minimum(c * _bpc + i, _nb - 1), 0)

    in_vmem = 2 * 2 * tile_r * L * itemsize        # 2 inputs x double buffer
    vmem_limit = int(min(48 << 20, max(16 << 20, 2 * in_vmem)))  # v7x-safe cap

    sums = pl.pallas_call(
        kernel,
        out_shape=jax.ShapeDtypeStruct((nc, acc_rows, L), jnp.float32),
        grid_spec=pltpu.PrefetchScalarGridSpec(
            num_scalar_prefetch=0,
            grid=(nc, blocks_per_core),
            in_specs=[
                pl.BlockSpec((tile_r, L), in_map),
                pl.BlockSpec((tile_r, L), in_map),
            ],
            out_specs=pl.BlockSpec((1, acc_rows, L), lambda c, i: (c, 0, 0)),
        ),
        compiler_params=pltpu.CompilerParams(
            dimension_semantics=("parallel", "arbitrary"),
            vmem_limit_bytes=vmem_limit,
        ),
    )(x, y)

    # --- Tiny epilogue in plain JAX (kept out of the kernel per review).
    lane_sums = jnp.sum(sums, axis=(0, 1))                    # (L,)
    per_task_sum = jnp.sum(lane_sums.reshape(lb, T), axis=0)  # (T,)
    mae = per_task_sum / B                                    # == .mean(dim=0)
    lv = jnp.asarray(log_vars, jnp.float32)
    total = jnp.sum(jnp.exp(-lv) * mae + lv)
    return total, mae


if __name__ == "__main__":
    key = jax.random.PRNGKey(0)
    k1, k2, k3, k4, k5, k6 = jax.random.split(key, 6)

    def ref_loss(preds, targets, log_vars):
        p = preds.astype(jnp.float32)
        t = targets.astype(jnp.float32)
        mae = jnp.mean(jnp.abs(p - t), axis=0)
        lv = log_vars.astype(jnp.float32)
        return jnp.sum(jnp.exp(-lv) * mae + lv), mae

    # 1) Module-default shape: num_tasks=4, tiny batch (single-block path).
    B, T = 8, 4
    preds = jax.random.normal(k1, (B, T), jnp.float32)
    targets = jax.random.normal(k2, (B, T), jnp.float32)
    log_vars = jnp.zeros((T,), jnp.float32)   # nn.Parameter(torch.zeros(4))
    total, mae = multitask_loss(preds, targets, log_vars)
    jax.block_until_ready((total, mae))
    rt, rm = ref_loss(preds, targets, log_vars)
    assert jnp.allclose(mae, rm, atol=1e-6, rtol=1e-6)
    assert jnp.allclose(total, rt, atol=1e-6, rtol=1e-6)

    # 2) Ragged multi-block f32 case: exercises the 2-way core split, the
    #    clamped out-of-range step and the last-step row mask.
    B2, T2 = 2065, 4
    preds2 = jax.random.normal(k3, (B2, T2), jnp.float32)
    targets2 = jax.random.normal(k4, (B2, T2), jnp.float32)
    lv2 = 0.1 * jnp.arange(T2, dtype=jnp.float32)
    total2, mae2 = multitask_loss(preds2, targets2, lv2,
                                  target_step_bytes=32 * 1024)
    jax.block_until_ready((total2, mae2))
    rt2, rm2 = ref_loss(preds2, targets2, lv2)
    assert jnp.allclose(mae2, rm2, atol=1e-5, rtol=1e-5)
    assert jnp.allclose(total2, rt2, atol=1e-5, rtol=1e-5)

    # 3) bf16 inputs, evenly tiled multi-step path (in-kernel upcast to f32).
    B3, T3 = 4096, 4
    preds3 = jax.random.normal(k5, (B3, T3), jnp.float32).astype(jnp.bfloat16)
    targets3 = jax.random.normal(k6, (B3, T3), jnp.float32).astype(jnp.bfloat16)
    lv3 = -0.2 * jnp.ones((T3,), jnp.float32)
    total3, mae3 = multitask_loss(preds3, targets3, lv3,
                                  target_step_bytes=16 * 1024)
    jax.block_until_ready((total3, mae3))
    rt3, rm3 = ref_loss(preds3, targets3, lv3)
    assert jnp.allclose(mae3, rm3, atol=1e-4, rtol=1e-4)
    assert jnp.allclose(total3, rt3, atol=1e-4, rtol=1e-4)

    print("KERNEL_OK")
</pallas_src>

<mosaic_0001>
module attributes {stable_mosaic.version = 11 : i64} {
  func.func @_abs_diff_sum_kernel(%arg0: i32, %arg1: i32, %arg2: memref<1x128xf32, #tpu.memory_space<vmem>>, %arg3: memref<1x128xf32, #tpu.memory_space<vmem>>, %arg4: memref<1x1x128xf32, #tpu.memory_space<vmem>>) attributes {dimension_semantics = [#tpu.dimension_semantics<parallel>, #tpu.dimension_semantics<arbitrary>], iteration_bounds = array<i64: 1, 1>, scalar_prefetch = 0 : i64, scratch_operands = 0 : i64, tpu.core_type = #tpu.core_type<tc>, window_params = [{transform_indices = @transform_0, window_bounds = array<i64: 1, 128>}, {transform_indices = @transform_1, window_bounds = array<i64: 1, 128>}, {transform_indices = @transform_2, window_bounds = array<i64: 1, 1, 128>}]} {
    %c0_i32 = arith.constant 0 : i32
    %0 = arith.cmpi eq, %arg1, %c0_i32 : i32
    %1 = arith.extui %0 : i1 to i32
    %c0_i32_0 = arith.constant 0 : i32
    %2 = arith.cmpi ne, %1, %c0_i32_0 : i32
    scf.if %2 {
      %cst_10 = arith.constant 0.000000e+00 : f32
      %13 = vector.broadcast %cst_10 : f32 to vector<1x1x128xf32>
      %c0_11 = arith.constant 0 : index
      %c0_12 = arith.constant 0 : index
      %c0_13 = arith.constant 0 : index
      %14 = vector.load %arg4[%c0_11, %c0_12, %c0_13] : memref<1x1x128xf32, #tpu.memory_space<vmem>>, vector<1x1x128xf32>
      tpu.vector_store %arg4[%c0_11, %c0_12, %c0_13], %13 {strides = array<i32>} : memref<1x1x128xf32, #tpu.memory_space<vmem>>, vector<1x1x128xf32>,
    } else {
    }
    %c0 = arith.constant 0 : index
    %c0_1 = arith.constant 0 : index
    %3 = vector.load %arg2[%c0, %c0_1] : memref<1x128xf32, #tpu.memory_space<vmem>>, vector<1x128xf32>
    %c0_2 = arith.constant 0 : index
    %c0_3 = arith.constant 0 : index
    %4 = vector.load %arg3[%c0_2, %c0_3] : memref<1x128xf32, #tpu.memory_space<vmem>>, vector<1x128xf32>
    %5 = arith.subf %3, %4 : vector<1x128xf32>
    %6 = math.absf %5 : vector<1x128xf32>
    %cst = arith.constant dense<0.000000e+00> : vector<128xf32>
    %7 = vector.multi_reduction <add>, %6, %cst [0] : vector<1x128xf32> to vector<128xf32>
    %8 = vector.shape_cast %7 : vector<128xf32> to vector<1x128xf32>
    %c0_4 = arith.constant 0 : index
    %c0_5 = arith.constant 0 : index
    %c0_6 = arith.constant 0 : index
    %9 = vector.load %arg4[%c0_4, %c0_5, %c0_6] : memref<1x1x128xf32, #tpu.memory_space<vmem>>, vector<1x1x128xf32>
    %10 = vector.shape_cast %8 : vector<1x128xf32> to vector<1x1x128xf32>
    %11 = arith.addf %9, %10 : vector<1x1x128xf32>
    %c0_7 = arith.constant 0 : index
    %c0_8 = arith.constant 0 : index
    %c0_9 = arith.constant 0 : index
    %12 = vector.load %arg4[%c0_7, %c0_8, %c0_9] : memref<1x1x128xf32, #tpu.memory_space<vmem>>, vector<1x1x128xf32>
    tpu.vector_store %arg4[%c0_7, %c0_8, %c0_9], %11 {strides = array<i32>} : memref<1x1x128xf32, #tpu.memory_space<vmem>>, vector<1x1x128xf32>,
    return
  }
  func.func @transform_0(%arg0: i32, %arg1: i32) -> (i32, i32) {
    %c1_i32 = arith.constant 1 : i32
    %0 = arith.muli %arg0, %c1_i32 : i32
    %1 = arith.addi %0, %arg1 : i32
    %c0_i32 = arith.constant 0 : i32
    %2 = arith.minsi %1, %c0_i32 : i32
    %c0_i32_0 = arith.constant 0 : i32
    %c0_i32_1 = arith.constant 0 : i32
    return %2, %c0_i32_0 : i32, i32
  }
  func.func @transform_1(%arg0: i32, %arg1: i32) -> (i32, i32) {
    %c1_i32 = arith.constant 1 : i32
    %0 = arith.muli %arg0, %c1_i32 : i32
    %1 = arith.addi %0, %arg1 : i32
    %c0_i32 = arith.constant 0 : i32
    %2 = arith.minsi %1, %c0_i32 : i32
    %c0_i32_0 = arith.constant 0 : i32
    %c0_i32_1 = arith.constant 0 : i32
    return %2, %c0_i32_0 : i32, i32
  }
  func.func @transform_2(%arg0: i32, %arg1: i32) -> (i32, i32, i32) {
    %c0_i32 = arith.constant 0 : i32
    %c0_i32_0 = arith.constant 0 : i32
    %c0_i32_1 = arith.constant 0 : i32
    return %arg0, %c0_i32, %c0_i32_0 : i32, i32, i32
  }
}

</mosaic_0001>

<llo_original>
// kernel: tpu_custom_call.1
$region0: #{tpu_custom_call.1}
  #allocation0 [shape = 'u32[]', space=smem, size = 0x4, offset = 0x4, fixed_abs, tag = 'smem constant byte address 0x4 - core index']
  #allocation1 [shape = 'u32[144,128]{1,0:T(1,128)}', space=vmem, size = 0x12000, scoped, tag = 'internal scratch']
  %s0 = inlined_call_operand.hbm [shape: f32[1,128], index: 0, kind: input, shape index: {}]
  %s1 = inlined_call_operand.vmem [shape: f32[1,128], index: 1, kind: input, shape index: {}]
  %s2 = inlined_call_operand.hbm [shape: f32[1,1,128], index: 2, kind: output, shape index: {}]
  %s3 = sld [smem:[#allocation0]]
  $region26: #{tpu_custom_call.1} parent=0
    _
  %s5 = ssub.s32 1, %s3
  %s6 = scalar_select 0, %s5, %s3
  $region1: #{tpu_custom_call.1} parent=0
    #allocation2 [shape = 'u8[512]{0}', space=vmem, size = 0x400, scoped, tag = 'input window, operand 0, single buffered']
    #allocation3 [shape = 's32[1]{0}', space=sflag, size = 0x4, scoped, tag = 'scoped memory for tpu_custom_call.1']
    #allocation4 [shape = 's32[1]{0}', space=sflag, size = 0x4, scoped, tag = 'scoped memory for tpu_custom_call.1']
    #allocation5 [shape = 'u8[512]{0}', space=vmem, size = 0x400, scoped, tag = 'output window, operand 0, single buffered']
    %7 = vsyncpa [#allocation3], 0
    %8 = vsyncpa [#allocation4], 0
    // Predicated region
    $region2: #{tpu_custom_call.1} parent=1 // pred_check
      _
    $region3: #{tpu_custom_call.1} parent=1 // pred_check_branch
      %10 = sbr.rel (0) target = $region5
    $region4: #{tpu_custom_call.1} parent=1 // pred_region
      %s11 = sadd.s32 0, 0
      %p12 = scmp.lt.s32.totalorder %s11, 0
      %s13 = scalar_select %p12, %s11, 0
      %s15 = ssub.s32 16, 16
      %16 = vsyncadd [#allocation3], %s15
      %s17 = smul.addr %s13, 16
      %s18 = scalar_lea.hbm %s0, %s17
      %s20 = sshll.u32 [#allocation2], 4
      %s21 = int_to_ptr.vmem [resolvable:$true] %s20
      %23 = dma.hbm_to_vmem [thread:$0]  %s18, 16, %s21, [#allocation3]
    $region5: #{tpu_custom_call.1} parent=1 // pred_fallthru
      _
    // Predicated region
    $region6: #{tpu_custom_call.1} parent=1 // pred_check
      _
    $region7: #{tpu_custom_call.1} parent=1 // pred_check_branch
      %25 = sbr.rel (0) target = $region9
    $region8: #{tpu_custom_call.1} parent=1 // pred_region
      %s26 = sadd.s32 0, 0
      %p27 = scmp.lt.s32.totalorder %s26, 0
      %s28 = scalar_select %p27, %s26, 0
      %p29 = scmp.lt.s32.totalorder %s28, 0
      %s30 = scalar_select %p29, %s28, 0
      %s31 = scalar_lea.vmem %s1, %s30
      %s32 = sadd.s32 0, 0
      %p33 = scmp.lt.s32.totalorder %s32, 0
      %s34 = scalar_select %p33, %s32, 0
    $region9: #{tpu_custom_call.1} parent=1 // pred_fallthru
      _
    // Predicated region
    $region10: #{tpu_custom_call.1} parent=1 // pred_check
      _
    $region11: #{tpu_custom_call.1} parent=1 // pred_check_branch
      %36 = sbr.rel (0) target = $region13
    $region12: #{tpu_custom_call.1} parent=1 // pred_region
      %37 = dma.done [#allocation3], 16
    $region13: #{tpu_custom_call.1} parent=1 // pred_fallthru
      _
    %s38 = sadd.s32 0, 0
    %p39 = scmp.lt.s32.totalorder %s38, 0
    %s40 = scalar_select %p39, %s38, 0
    %p41 = scmp.lt.s32.totalorder %s40, 0
    %s42 = scalar_select %p41, %s40, 0
    %s43 = scalar_lea.vmem %s1, %s42
    %s44 = sadd.s32 0, 0
    %p45 = scmp.lt.s32.totalorder %s44, 0
    %s46 = scalar_select %p45, %s44, 0
    %s47 = sadd.s32 0, 0
    %p48 = scmp.lt.s32.totalorder %s47, 0
    %s49 = scalar_select %p48, %s47, 0
    %p50 = scmp.lt.s32.totalorder %s49, 0
    %s51 = scalar_select %p50, %s49, 0
    %s52 = scalar_lea.vmem %s1, %s51
    %s53 = sadd.s32 0, 0
    %p54 = scmp.lt.s32.totalorder %s53, 0
    %s55 = scalar_select %p54, %s53, 0
    %p56 = scmp.eq.s32.totalorder 0, 0
    // Predicated region
    $region14: #{tpu_custom_call.1} parent=1 // pred_check
      %p57 = pneg %p56
    $region15: #{tpu_custom_call.1} parent=1 // pred_check_branch
      %59 = sbr.rel (%p57) target = $region17
    $region16: #{tpu_custom_call.1} parent=1 // pred_region
      %60 = vst [vmem:[#allocation5] sm:$0x1] 0.0
    $region17: #{tpu_custom_call.1} parent=1 // pred_fallthru
      _
    %v61 = vld [vmem:[#allocation2] sm:$0x1]
    %v62 = vld [vmem:[%s52] sm:$0x1]
    %v63 = vsub.f32 %v61, %v62
    %v64 = vand.u32 2147483647, %v63
    %v65 = vadd.f32 %v64, 0.0
    %v66 = vld [vmem:[#allocation5] sm:$0x1]
    %v67 = vadd.f32 %v66, %v65
    %68 = vst [vmem:[#allocation5] sm:$0x1] %v67
    // Predicated region
    $region18: #{tpu_custom_call.1} parent=1 // pred_check
      _
    $region19: #{tpu_custom_call.1} parent=1 // pred_check_branch
      %70 = sbr.rel (0) target = $region21
    $region20: #{tpu_custom_call.1} parent=1 // pred_region
      %s72 = ssub.s32 16, 16
      %73 = vsyncadd [#allocation4], %s72
      %s75 = sshll.u32 [#allocation5], 4
      %s76 = int_to_ptr.vmem [resolvable:$true] %s75
      %78 = dma.vmem_to_hbm [thread:$0]  %s76, 16, %s2, [#allocation4]
    $region21: #{tpu_custom_call.1} parent=1 // pred_fallthru
      _
    // Predicated region
    $region22: #{tpu_custom_call.1} parent=1 // pred_check
      _
    $region23: #{tpu_custom_call.1} parent=1 // pred_check_branch
      %80 = sbr.rel (0) target = $region25
    $region24: #{tpu_custom_call.1} parent=1 // pred_region
      %81 = dma.done [#allocation4], 16
    $region25: #{tpu_custom_call.1} parent=1 // pred_fallthru
      _
    %82 = vsyncpa [#allocation3], 1
    %83 = vsyncpa [#allocation4], 1

</llo_original>
